<compile_context>
chip_gen: v5e
topology: v5e:2x2
jax: 0.10.0
libtpu: 0.0.40
codegen_flags: <defaults>
</compile_context>

<pallas_src>
import functools

import jax
import jax.numpy as jnp
from jax.experimental import pallas as pl
from jax.experimental.pallas import tpu as pltpu


def _split(total, parts):
    """Static (offset, size) chunks covering [0, total) in <= `parts` pieces."""
    parts = max(1, min(parts, total))
    base, rem = divmod(total, parts)
    chunks, off = [], 0
    for i in range(parts):
        sz = base + (1 if i < rem else 0)
        chunks.append((off, sz))
        off += sz
    return chunks


def _skip_cat_dma_kernel(rows_per_core, row_chunks, x_col_chunks, s_col_chunks,
                         band_x, x_ref, s_ref, o_ref, sem):
    """Channel concat via overlapped HBM->HBM sub-DMAs.

    x_ref: (N, C_in*HW)           in HBM (memory_space=pl.ANY)
    s_ref: (N, C_skip*HW)         in HBM
    o_ref: (N, (C_in+C_skip)*HW)  in HBM
    sem:   DMA semaphores, shape (2, k_r * k_c)
    Each grid step (one per TensorCore) copies its own disjoint batch range.
    """
    pid = pl.program_id(0)
    core_row0 = pid * rows_per_core
    k_c = len(x_col_chunks)

    # Start ALL sub-DMAs first (multiple in-flight copies -> more DMA queues),
    # then wait on all of them.  x / skip land in disjoint column bands of o.
    copies = []
    for ri, (roff, rsz) in enumerate(row_chunks):
        r0 = core_row0 + roff
        for ci in range(k_c):
            xoff, xsz = x_col_chunks[ci]
            soff, ssz = s_col_chunks[ci]
            idx = ri * k_c + ci
            cp_x = pltpu.make_async_copy(
                x_ref.at[pl.ds(r0, rsz), pl.ds(xoff, xsz)],
                o_ref.at[pl.ds(r0, rsz), pl.ds(xoff, xsz)],
                sem.at[0, idx])
            cp_s = pltpu.make_async_copy(
                s_ref.at[pl.ds(r0, rsz), pl.ds(soff, ssz)],
                o_ref.at[pl.ds(r0, rsz), pl.ds(band_x + soff, ssz)],
                sem.at[1, idx])
            cp_x.start()
            cp_s.start()
            copies.append((cp_x, cp_s))
    for cp_x, cp_s in copies:
        cp_x.wait()
        cp_s.wait()


def skip_cube_forward(x, x_skip, *, max_subcopies=8, min_cols_per_copy=512,
                      min_pallas_bytes=256 * 1024, force_pallas=False):
    """SkipCube forward for the default configuration.

    Only the default module configuration is implemented here:
      cube / skip_cube / orig_cube / post_cube identity, skip_mode='cat',
      skip_dropout = orig_dropout = swap_p = 0.
    # TODO(synk): non-default configurations (non-identity sub-cubes, dropout,
    # swap_p, other skip modes) are not implemented.

    x:      (N, C_in,   H, W)
    x_skip: (N, C_skip, H, W)
    returns (N, C_in + C_skip, H, W), same dtype as x.
    """
    assert x.dtype == x_skip.dtype, "x and x_skip must share a dtype"
    n, c_in, h, w = x.shape
    n2, c_skip, h2, w2 = x_skip.shape
    assert (n, h, w) == (n2, h2, w2), "batch / spatial dims must match"
    hw = h * w
    c_out = c_in + c_skip

    total_in_bytes = x.nbytes + x_skip.nbytes
    if not force_pallas and total_in_bytes < min_pallas_bytes:
        # Tiny tensors: pallas_call launch + DMA descriptor setup dominates;
        # let XLA fuse/inline the concat instead.
        return jnp.concatenate([x, x_skip], axis=1)

    # Flatten to 2-D so each per-batch channel band is ONE contiguous run of
    # C*HW elements (fewer, larger DMA segments than C rows of HW each).
    band_x = c_in * hw
    band_s = c_skip * hw
    band_o = band_x + band_s
    x2 = x.reshape(n, band_x)
    s2 = x_skip.reshape(n, band_s)

    # Split the batch across TensorCores (only pays off on v7x's 2 TCs; the
    # two grid steps just run sequentially on v5e/v6e).
    num_cores = 2 if (n >= 2 and n % 2 == 0) else 1
    rows_per_core = n // num_cores

    # Per-core sub-DMA plan: split over batch rows first, then (if the batch
    # split alone gives too few in-flight copies) over the flattened band.
    row_chunks = _split(rows_per_core, max_subcopies)
    k_r = len(row_chunks)
    k_c = max(1, max_subcopies // k_r)
    min_band = min(band_x, band_s)
    while k_c > 1 and (min_band // k_c) < min_cols_per_copy:
        k_c //= 2
    x_col_chunks = _split(band_x, k_c)
    s_col_chunks = _split(band_s, k_c)
    k_c = len(x_col_chunks)  # == len(s_col_chunks) since k_c <= min_band

    kernel = functools.partial(
        _skip_cat_dma_kernel, rows_per_core, row_chunks,
        x_col_chunks, s_col_chunks, band_x)

    out = pl.pallas_call(
        kernel,
        out_shape=jax.ShapeDtypeStruct((n, band_o), x.dtype),
        grid=(num_cores,),
        in_specs=[
            pl.BlockSpec(memory_space=pl.ANY),  # x stays in HBM, no auto-DMA
            pl.BlockSpec(memory_space=pl.ANY),  # x_skip stays in HBM
        ],
        out_specs=pl.BlockSpec(memory_space=pl.ANY),  # written via explicit DMA
        scratch_shapes=[pltpu.SemaphoreType.DMA((2, k_r * k_c))],
        compiler_params=pltpu.CompilerParams(
            dimension_semantics=("parallel",)),
        cost_estimate=pl.CostEstimate(
            flops=0, transcendentals=0,
            bytes_accessed=2 * total_in_bytes),  # read everything + write it
    )(x2, s2)

    return out.reshape(n, c_out, h, w)


if __name__ == "__main__":
    key = jax.random.PRNGKey(0)
    k1, k2, k3, k4 = jax.random.split(key, 4)

    # SkipCube(in_channels=4, out_channels=8, skip_channels=4, ndim=2) defaults.
    N, C_IN, C_SKIP, H, W = 2, 4, 4, 16, 16
    x = jax.random.normal(k1, (N, C_IN, H, W), dtype=jnp.float32)
    x_skip = jax.random.normal(k2, (N, C_SKIP, H, W), dtype=jnp.float32)
    ref = jnp.concatenate([x, x_skip], axis=1)

    # Force the Pallas DMA path even at this tiny size so the kernel is exercised
    # (exercises the dual-core grid + column-split sub-DMA path).
    out = jax.block_until_ready(skip_cube_forward(x, x_skip, force_pallas=True))
    assert out.shape == (N, C_IN + C_SKIP, H, W)
    assert jnp.array_equal(out, ref)

    # Auto path at this size takes the small-tensor jnp.concatenate fallback.
    out_auto = jax.block_until_ready(skip_cube_forward(x, x_skip))
    assert jnp.array_equal(out_auto, ref)

    # Odd batch / unequal channel counts (single-core grid, per-row sub-DMAs).
    N2, C_IN2, C_SKIP2 = 3, 4, 2
    x_b = jax.random.normal(k3, (N2, C_IN2, H, W), dtype=jnp.float32)
    s_b = jax.random.normal(k4, (N2, C_SKIP2, H, W), dtype=jnp.float32)
    out_b = jax.block_until_ready(skip_cube_forward(x_b, s_b, force_pallas=True))
    assert jnp.array_equal(out_b, jnp.concatenate([x_b, s_b], axis=1))

    print("KERNEL_OK")
</pallas_src>

<mosaic_0001>
module attributes {stable_mosaic.version = 11 : i64} {
  func.func @_skip_cat_dma_kernel(%arg0: i32, %arg1: memref<2x1024xf32, #tpu.memory_space<any>>, %arg2: memref<2x1024xf32, #tpu.memory_space<any>>, %arg3: memref<2x2048xf32, #tpu.memory_space<any>>, %arg4: memref<2x2x!tpu.dma_semaphore, #tpu.memory_space<semaphore_mem>>) attributes {dimension_semantics = [#tpu.dimension_semantics<parallel>], iteration_bounds = array<i64: 2>, scalar_prefetch = 0 : i64, scratch_operands = 1 : i64, tpu.core_type = #tpu.core_type<tc>, window_params = [{}, {}, {}]} {
    %c1_i32 = arith.constant 1 : i32
    %0 = arith.muli %arg0, %c1_i32 : i32
    %c0_i32 = arith.constant 0 : i32
    %1 = arith.addi %0, %c0_i32 : i32
    %c0_i32_0 = arith.constant 0 : i32
    %c0_i32_1 = arith.constant 0 : i32
    %c0_i32_2 = arith.constant 0 : i32
    %2 = tpu.memref_slice %arg1[%1, %c0_i32_2] : memref<2x1024xf32, #tpu.memory_space<any>> -> memref<1x512xf32, #tpu.memory_space<any>>
    %c0_i32_3 = arith.constant 0 : i32
    %3 = tpu.memref_slice %arg3[%1, %c0_i32_3] : memref<2x2048xf32, #tpu.memory_space<any>> -> memref<1x512xf32, #tpu.memory_space<any>>
    %4 = tpu.memref_slice %arg4[%c0_i32_0, %c0_i32_1] : memref<2x2x!tpu.dma_semaphore, #tpu.memory_space<semaphore_mem>> -> memref<1x1x!tpu.dma_semaphore, #tpu.memory_space<semaphore_mem>>
    %5 = tpu.memref_squeeze %4 : memref<1x1x!tpu.dma_semaphore, #tpu.memory_space<semaphore_mem>> -> memref<!tpu.dma_semaphore, #tpu.memory_space<semaphore_mem>>
    tpu.enqueue_dma source(%2 : memref<1x512xf32, #tpu.memory_space<any>>) target(%3 : memref<1x512xf32, #tpu.memory_space<any>>) target_semaphore(%5 : memref<!tpu.dma_semaphore, #tpu.memory_space<semaphore_mem>>)
    %c1_i32_4 = arith.constant 1 : i32
    %c0_i32_5 = arith.constant 0 : i32
    %c0_i32_6 = arith.constant 0 : i32
    %6 = tpu.memref_slice %arg2[%1, %c0_i32_6] : memref<2x1024xf32, #tpu.memory_space<any>> -> memref<1x512xf32, #tpu.memory_space<any>>
    %c1024_i32 = arith.constant 1024 : i32
    %7 = tpu.memref_slice %arg3[%1, %c1024_i32] : memref<2x2048xf32, #tpu.memory_space<any>> -> memref<1x512xf32, #tpu.memory_space<any>>
    %8 = tpu.memref_slice %arg4[%c1_i32_4, %c0_i32_5] : memref<2x2x!tpu.dma_semaphore, #tpu.memory_space<semaphore_mem>> -> memref<1x1x!tpu.dma_semaphore, #tpu.memory_space<semaphore_mem>>
    %9 = tpu.memref_squeeze %8 : memref<1x1x!tpu.dma_semaphore, #tpu.memory_space<semaphore_mem>> -> memref<!tpu.dma_semaphore, #tpu.memory_space<semaphore_mem>>
    tpu.enqueue_dma source(%6 : memref<1x512xf32, #tpu.memory_space<any>>) target(%7 : memref<1x512xf32, #tpu.memory_space<any>>) target_semaphore(%9 : memref<!tpu.dma_semaphore, #tpu.memory_space<semaphore_mem>>)
    %c0_i32_7 = arith.constant 0 : i32
    %c1_i32_8 = arith.constant 1 : i32
    %c512_i32 = arith.constant 512 : i32
    %10 = tpu.memref_slice %arg1[%1, %c512_i32] : memref<2x1024xf32, #tpu.memory_space<any>> -> memref<1x512xf32, #tpu.memory_space<any>>
    %c512_i32_9 = arith.constant 512 : i32
    %11 = tpu.memref_slice %arg3[%1, %c512_i32_9] : memref<2x2048xf32, #tpu.memory_space<any>> -> memref<1x512xf32, #tpu.memory_space<any>>
    %12 = tpu.memref_slice %arg4[%c0_i32_7, %c1_i32_8] : memref<2x2x!tpu.dma_semaphore, #tpu.memory_space<semaphore_mem>> -> memref<1x1x!tpu.dma_semaphore, #tpu.memory_space<semaphore_mem>>
    %13 = tpu.memref_squeeze %12 : memref<1x1x!tpu.dma_semaphore, #tpu.memory_space<semaphore_mem>> -> memref<!tpu.dma_semaphore, #tpu.memory_space<semaphore_mem>>
    tpu.enqueue_dma source(%10 : memref<1x512xf32, #tpu.memory_space<any>>) target(%11 : memref<1x512xf32, #tpu.memory_space<any>>) target_semaphore(%13 : memref<!tpu.dma_semaphore, #tpu.memory_space<semaphore_mem>>)
    %c1_i32_10 = arith.constant 1 : i32
    %c1_i32_11 = arith.constant 1 : i32
    %c512_i32_12 = arith.constant 512 : i32
    %14 = tpu.memref_slice %arg2[%1, %c512_i32_12] : memref<2x1024xf32, #tpu.memory_space<any>> -> memref<1x512xf32, #tpu.memory_space<any>>
    %c1536_i32 = arith.constant 1536 : i32
    %15 = tpu.memref_slice %arg3[%1, %c1536_i32] : memref<2x2048xf32, #tpu.memory_space<any>> -> memref<1x512xf32, #tpu.memory_space<any>>
    %16 = tpu.memref_slice %arg4[%c1_i32_10, %c1_i32_11] : memref<2x2x!tpu.dma_semaphore, #tpu.memory_space<semaphore_mem>> -> memref<1x1x!tpu.dma_semaphore, #tpu.memory_space<semaphore_mem>>
    %17 = tpu.memref_squeeze %16 : memref<1x1x!tpu.dma_semaphore, #tpu.memory_space<semaphore_mem>> -> memref<!tpu.dma_semaphore, #tpu.memory_space<semaphore_mem>>
    tpu.enqueue_dma source(%14 : memref<1x512xf32, #tpu.memory_space<any>>) target(%15 : memref<1x512xf32, #tpu.memory_space<any>>) target_semaphore(%17 : memref<!tpu.dma_semaphore, #tpu.memory_space<semaphore_mem>>)
    %c0_i32_13 = arith.constant 0 : i32
    %c0_i32_14 = arith.constant 0 : i32
    %c0_i32_15 = arith.constant 0 : i32
    %18 = tpu.memref_slice %arg1[%1, %c0_i32_15] : memref<2x1024xf32, #tpu.memory_space<any>> -> memref<1x512xf32, #tpu.memory_space<any>>
    %c0_i32_16 = arith.constant 0 : i32
    %19 = tpu.memref_slice %arg3[%1, %c0_i32_16] : memref<2x2048xf32, #tpu.memory_space<any>> -> memref<1x512xf32, #tpu.memory_space<any>>
    %20 = tpu.memref_slice %arg4[%c0_i32_13, %c0_i32_14] : memref<2x2x!tpu.dma_semaphore, #tpu.memory_space<semaphore_mem>> -> memref<1x1x!tpu.dma_semaphore, #tpu.memory_space<semaphore_mem>>
    %21 = tpu.memref_squeeze %20 : memref<1x1x!tpu.dma_semaphore, #tpu.memory_space<semaphore_mem>> -> memref<!tpu.dma_semaphore, #tpu.memory_space<semaphore_mem>>
    tpu.wait_dma2 semaphore(%21 : memref<!tpu.dma_semaphore, #tpu.memory_space<semaphore_mem>>) src(%18 : memref<1x512xf32, #tpu.memory_space<any>>) dst(%19 : memref<1x512xf32, #tpu.memory_space<any>>)
    %c1_i32_17 = arith.constant 1 : i32
    %c0_i32_18 = arith.constant 0 : i32
    %c0_i32_19 = arith.constant 0 : i32
    %22 = tpu.memref_slice %arg2[%1, %c0_i32_19] : memref<2x1024xf32, #tpu.memory_space<any>> -> memref<1x512xf32, #tpu.memory_space<any>>
    %c1024_i32_20 = arith.constant 1024 : i32
    %23 = tpu.memref_slice %arg3[%1, %c1024_i32_20] : memref<2x2048xf32, #tpu.memory_space<any>> -> memref<1x512xf32, #tpu.memory_space<any>>
    %24 = tpu.memref_slice %arg4[%c1_i32_17, %c0_i32_18] : memref<2x2x!tpu.dma_semaphore, #tpu.memory_space<semaphore_mem>> -> memref<1x1x!tpu.dma_semaphore, #tpu.memory_space<semaphore_mem>>
    %25 = tpu.memref_squeeze %24 : memref<1x1x!tpu.dma_semaphore, #tpu.memory_space<semaphore_mem>> -> memref<!tpu.dma_semaphore, #tpu.memory_space<semaphore_mem>>
    tpu.wait_dma2 semaphore(%25 : memref<!tpu.dma_semaphore, #tpu.memory_space<semaphore_mem>>) src(%22 : memref<1x512xf32, #tpu.memory_space<any>>) dst(%23 : memref<1x512xf32, #tpu.memory_space<any>>)
    %c0_i32_21 = arith.constant 0 : i32
    %c1_i32_22 = arith.constant 1 : i32
    %c512_i32_23 = arith.constant 512 : i32
    %26 = tpu.memref_slice %arg1[%1, %c512_i32_23] : memref<2x1024xf32, #tpu.memory_space<any>> -> memref<1x512xf32, #tpu.memory_space<any>>
    %c512_i32_24 = arith.constant 512 : i32
    %27 = tpu.memref_slice %arg3[%1, %c512_i32_24] : memref<2x2048xf32, #tpu.memory_space<any>> -> memref<1x512xf32, #tpu.memory_space<any>>
    %28 = tpu.memref_slice %arg4[%c0_i32_21, %c1_i32_22] : memref<2x2x!tpu.dma_semaphore, #tpu.memory_space<semaphore_mem>> -> memref<1x1x!tpu.dma_semaphore, #tpu.memory_space<semaphore_mem>>
    %29 = tpu.memref_squeeze %28 : memref<1x1x!tpu.dma_semaphore, #tpu.memory_space<semaphore_mem>> -> memref<!tpu.dma_semaphore, #tpu.memory_space<semaphore_mem>>
    tpu.wait_dma2 semaphore(%29 : memref<!tpu.dma_semaphore, #tpu.memory_space<semaphore_mem>>) src(%26 : memref<1x512xf32, #tpu.memory_space<any>>) dst(%27 : memref<1x512xf32, #tpu.memory_space<any>>)
    %c1_i32_25 = arith.constant 1 : i32
    %c1_i32_26 = arith.constant 1 : i32
    %c512_i32_27 = arith.constant 512 : i32
    %30 = tpu.memref_slice %arg2[%1, %c512_i32_27] : memref<2x1024xf32, #tpu.memory_space<any>> -> memref<1x512xf32, #tpu.memory_space<any>>
    %c1536_i32_28 = arith.constant 1536 : i32
    %31 = tpu.memref_slice %arg3[%1, %c1536_i32_28] : memref<2x2048xf32, #tpu.memory_space<any>> -> memref<1x512xf32, #tpu.memory_space<any>>
    %32 = tpu.memref_slice %arg4[%c1_i32_25, %c1_i32_26] : memref<2x2x!tpu.dma_semaphore, #tpu.memory_space<semaphore_mem>> -> memref<1x1x!tpu.dma_semaphore, #tpu.memory_space<semaphore_mem>>
    %33 = tpu.memref_squeeze %32 : memref<1x1x!tpu.dma_semaphore, #tpu.memory_space<semaphore_mem>> -> memref<!tpu.dma_semaphore, #tpu.memory_space<semaphore_mem>>
    tpu.wait_dma2 semaphore(%33 : memref<!tpu.dma_semaphore, #tpu.memory_space<semaphore_mem>>) src(%30 : memref<1x512xf32, #tpu.memory_space<any>>) dst(%31 : memref<1x512xf32, #tpu.memory_space<any>>)
    return
  }
}

</mosaic_0001>

<llo_original>
// kernel: tpu_custom_call.1
$region0: #{tpu_custom_call.1}
  #allocation0 [shape = 'u32[]', space=smem, size = 0x4, offset = 0x4, fixed_abs, tag = 'smem constant byte address 0x4 - core index']
  #allocation1 [shape = 'u32[72,128]{1,0:T(1,128)}', space=vmem, size = 0x9000, scoped, tag = 'internal scratch']
  #allocation2 [shape = 's32[4]{0}', space=sflag, size = 0x10, scoped, tag = 'scratch operand']
  #allocation3 [shape = 's32[]', space=sflag, size = 0x4, offset = 0, fixed_abs, tag = 'sflag constant byte address 0x0 - dummy sync flag']
  #allocation5 [shape = 's32[]', space=sflag, size = 0x4, offset = 0, fixed_abs, tag = 'sflag constant byte address 0x0 - dummy sync flag']
  #allocation7 [shape = 's32[]', space=sflag, size = 0x4, offset = 0, fixed_abs, tag = 'sflag constant byte address 0x0 - dummy sync flag']
  #allocation9 [shape = 's32[]', space=sflag, size = 0x4, offset = 0, fixed_abs, tag = 'sflag constant byte address 0x0 - dummy sync flag']
  %s0 = inlined_call_operand.hbm [shape: f32[2,1024], index: 0, kind: input, shape index: {}]
  %s1 = inlined_call_operand.hbm [shape: f32[2,1024], index: 1, kind: input, shape index: {}]
  %s2 = inlined_call_operand.hbm [shape: f32[2,2048], index: 2, kind: output, shape index: {}]
  %s3 = sld [smem:[#allocation0]]
  $region9: #{tpu_custom_call.1} parent=0
    _
  %s5 = ssub.s32 1, %s3
  %s6 = scalar_select 0, %s5, %s3
  loop: start=0, step=1, limit=2
  $region2: #{tpu_custom_call.1} parent=0 // loop_pre_header
    _
  $region3: #{tpu_custom_call.1} parent=0 // loop_header
    %s8 = sphi 0, %s12
    %p9 = scmp.ge.s32.totalorder %s8, 2
  $region4: #{tpu_custom_call.1} parent=0 // loop_header_branch
    %11 = sbr.rel (%p9) target = $region8
  $region5: #{tpu_custom_call.1} parent=0 // loop_body
    #allocation4 [shape = 'u32[3]{0}', space=smem, size = 0xc, scoped, tag = 'DMA stride descriptor']
    #allocation6 [shape = 'u32[3]{0}', space=smem, size = 0xc, scoped, tag = 'DMA stride descriptor']
    #allocation8 [shape = 'u32[3]{0}', space=smem, size = 0xc, scoped, tag = 'DMA stride descriptor']
    #allocation10 [shape = 'u32[3]{0}', space=smem, size = 0xc, scoped, tag = 'DMA stride descriptor']
    %s13 = sadd.s32 %s8, 1
    %s14 = sshrl.u32 %s8, 1
    %s15 = sand.u32 %s8, 1
    %s16 = smul.u32 %s14, 16
    %s17 = sadd.s32 %s15, %s16
    %s18 = scalar_lea.hbm %s0, %s17
    %s19 = smul.u32 %s14, 32
    %s20 = sadd.s32 %s15, %s19
    %s21 = scalar_lea.hbm %s2, %s20
    %s23 = sshll.u32 1, 14
    %s24 = sxor.u32 4294967295, %s23
    %s26 = sshll.u32 %s18, 4
    %s27 = int_to_ptr.hbm [resolvable:$true] %s26
    %s28 = sshll.u32 %s21, 4
    %s29 = int_to_ptr.hbm [resolvable:$true] %s28
    %33 = sst [smem:[#allocation4]] 32
    %s34 = scalar_lea.smem [#allocation4], 1
    %35 = sst [smem:[%s34]] 32
    %s36 = scalar_lea.smem [#allocation4], 2
    %37 = sst [smem:[%s36]] 1
    %39 = dma.general %s27, 64, %s29, [#allocation2], [#allocation3], [#allocation4], 0, 0
    %s40 = scalar_lea.hbm %s1, %s17
    %s41 = sadd.s32 16, %s20
    %s42 = scalar_lea.hbm %s2, %s41
    %s43 = scalar_lea.sflag [#allocation2], 2
    %s45 = sshll.u32 1, 14
    %s46 = sxor.u32 4294967295, %s45
    %s48 = sshll.u32 %s40, 4
    %s49 = int_to_ptr.hbm [resolvable:$true] %s48
    %s50 = sshll.u32 %s42, 4
    %s51 = int_to_ptr.hbm [resolvable:$true] %s50
    %55 = sst [smem:[#allocation6]] 32
    %s56 = scalar_lea.smem [#allocation6], 1
    %57 = sst [smem:[%s56]] 32
    %s58 = scalar_lea.smem [#allocation6], 2
    %59 = sst [smem:[%s58]] 1
    %61 = dma.general %s49, 64, %s51, %s43, [#allocation5], [#allocation6], 0, 0
    %s62 = sadd.s32 8, %s17
    %s63 = scalar_lea.hbm %s0, %s62
    %s64 = sadd.s32 8, %s20
    %s65 = scalar_lea.hbm %s2, %s64
    %s66 = scalar_lea.sflag [#allocation2], 1
    %s68 = sshll.u32 1, 14
    %s69 = sxor.u32 4294967295, %s68
    %s71 = sshll.u32 %s63, 4
    %s72 = int_to_ptr.hbm [resolvable:$true] %s71
    %s73 = sshll.u32 %s65, 4
    %s74 = int_to_ptr.hbm [resolvable:$true] %s73
    %78 = sst [smem:[#allocation8]] 32
    %s79 = scalar_lea.smem [#allocation8], 1
    %80 = sst [smem:[%s79]] 32
    %s81 = scalar_lea.smem [#allocation8], 2
    %82 = sst [smem:[%s81]] 1
    %84 = dma.general %s72, 64, %s74, %s66, [#allocation7], [#allocation8], 0, 0
    %s85 = scalar_lea.hbm %s1, %s62
    %s86 = sadd.s32 24, %s20
    %s87 = scalar_lea.hbm %s2, %s86
    %s88 = scalar_lea.sflag [#allocation2], 3
    %s90 = sshll.u32 1, 14
    %s91 = sxor.u32 4294967295, %s90
    %s93 = sshll.u32 %s85, 4
    %s94 = int_to_ptr.hbm [resolvable:$true] %s93
    %s95 = sshll.u32 %s87, 4
    %s96 = int_to_ptr.hbm [resolvable:$true] %s95
    %100 = sst [smem:[#allocation10]] 32
    %s101 = scalar_lea.smem [#allocation10], 1
    %102 = sst [smem:[%s101]] 32
    %s103 = scalar_lea.smem [#allocation10], 2
    %104 = sst [smem:[%s103]] 1
    %106 = dma.general %s94, 64, %s96, %s88, [#allocation9], [#allocation10], 0, 0
    %s107 = smul.u32 1, 4
    %s108 = sshll.u32 %s107, 4
    %109 = dma.done [#allocation2], %s108
    %s110 = sshll.u32 %s107, 4
    %111 = dma.done %s43, %s110
    %s112 = sshll.u32 %s107, 4
    %113 = dma.done %s66, %s112
    %s114 = sshll.u32 %s107, 4
    %115 = dma.done %s88, %s114
  $region6: #{tpu_custom_call.1} parent=0 // loop_footer
    %s12 = sadd.s32 1, %s8
  $region7: #{tpu_custom_call.1} parent=0 // loop_footer_branch
    %7 = sbr.rel target = $region3
  $region8: #{tpu_custom_call.1} parent=0 // loop_exit
    _
  %116 = vsyncmov [#allocation2]
  %s117 = vpop.sfrf %116
  %p118 = scmp.eq.s32.totalorder %s117, 0
  %p119 = pneg %p118
  %121 = shalt.err (%p119)
  %s122 = scalar_lea.sflag [#allocation2], 1
  %123 = vsyncmov %s122
  %s124 = vpop.sfrf %123
  %p125 = scmp.eq.s32.totalorder %s124, 0
  %p126 = pneg %p125
  %128 = shalt.err (%p126)
  %s129 = scalar_lea.sflag [#allocation2], 2
  %130 = vsyncmov %s129
  %s131 = vpop.sfrf %130
  %p132 = scmp.eq.s32.totalorder %s131, 0
  %p133 = pneg %p132
  %135 = shalt.err (%p133)
  %s136 = scalar_lea.sflag [#allocation2], 3
  %137 = vsyncmov %s136
  %s138 = vpop.sfrf %137
  %p139 = scmp.eq.s32.totalorder %s138, 0
  %p140 = pneg %p139
  %142 = shalt.err (%p140)

</llo_original>
